<compile_context>
chip_gen: v7x
topology: tpu7x:2x2x1
jax: 0.10.0
libtpu: 0.0.40
codegen_flags: <defaults>
</compile_context>

<pallas_src>
import math
import functools
import numpy as np
import jax
import jax.numpy as jnp
from jax.experimental import pallas as pl
from jax.experimental.pallas import tpu as pltpu


def _round_up(n, m):
    return ((n + m - 1) // m) * m


def _cdiv(a, b):
    return -(-a // b)


def _vmem_budget_bytes():
    """Usable VMEM per TensorCore, with headroom for compiler scratch.

    ~48 MiB on v7x (64 MiB physical per TC), ~102 MiB on v5e/v6e (128 MiB).
    """
    cap = 64 << 20                               # conservative default (v7x)
    try:
        cap = int(pltpu.get_tpu_info().vmem_capacity_bytes) or cap
    except Exception:
        pass
    return max(min(int(cap * 0.8), cap - (16 << 20)), 8 << 20)


# --------------------------------------------------------------------------
# Single-pass fused kernel: one (C, HW) block per batch.
# --------------------------------------------------------------------------
def _eca_fused_kernel(w_ref, x_ref, o_ref, *, C, K, PAD, inv_hw):
    # x_ref / o_ref: (C, HW_p) block of one batch; w_ref: (K,) taps in SMEM.
    # ---- global average pool: MXU lane-reduce, f32 accumulate -------------
    ones = jnp.ones((x_ref.shape[-1], 1), x_ref.dtype)
    avg = jnp.dot(x_ref[...], ones,
                  preferred_element_type=jnp.float32) * inv_hw      # (C, 1)
    # ---- K-tap "same" conv along channels, fully in registers -------------
    zpad = jnp.zeros((PAD, 1), jnp.float32)
    avg_p = jnp.concatenate([zpad, avg, zpad], axis=0)               # (C+2P, 1)
    conv = jnp.zeros_like(avg)
    for j in range(K):                                               # K tiny, static
        conv = conv + w_ref[j] * avg_p[j:j + C, :]
    gate = jax.nn.sigmoid(conv)                                      # (C, 1) f32
    # ---- gate multiply in f32 (matches reference); re-read x_ref so the
    #      full block is not kept live across the pool->conv->sigmoid chain.
    o_ref[...] = (x_ref[...].astype(jnp.float32) * gate).astype(o_ref.dtype)


# --------------------------------------------------------------------------
# Two-pass streaming fallback (large C*H*W or tiny B on v7x).
# --------------------------------------------------------------------------
def _eca_pool_kernel(x_ref, s_ref):
    @pl.when(pl.program_id(1) == 0)
    def _():
        s_ref[...] = jnp.zeros_like(s_ref)
    ones = jnp.ones((x_ref.shape[-1], 1), x_ref.dtype)
    s_ref[...] += jnp.dot(x_ref[...], ones, preferred_element_type=jnp.float32)


def _eca_gate_kernel(g_ref, x_ref, o_ref):
    o_ref[...] = (x_ref[...].astype(jnp.float32) * g_ref[...]).astype(o_ref.dtype)


# --------------------------------------------------------------------------
# Wrapper
# --------------------------------------------------------------------------
def eca_block(x, conv_w, *, donate_input=False):
    """ECA forward: sigmoid(conv1d(avg_pool(x))) * x.

    x: (B, C, H, W); conv_w: (k,) taps of Conv1d(1, 1, k, bias=False).
    """
    B, C, H, W = x.shape
    HW = H * W
    K = int(conv_w.shape[0])
    PAD = K // 2
    itemsize = x.dtype.itemsize
    inv_hw = 1.0 / float(HW)

    budget = _vmem_budget_bytes()

    # Lane-dense layout: channels on sublanes, H*W on lanes.
    C_p = _round_up(C, 8)
    HW_p = _round_up(HW, 128)
    x2 = x.reshape(B, C, HW)
    if C_p != C or HW_p != HW:
        # TODO(synk): padding costs one extra HBM round trip; only taken for
        # shapes that are not already (8, 128)-aligned.
        x2 = jnp.pad(x2, ((0, 0), (0, C_p - C), (0, HW_p - HW)))

    blk = C_p * HW_p * itemsize                  # one per-batch block
    need_fused = 4 * blk + (1 << 20)             # 2x in + 2x out double buffers
    # Single pass iff the per-batch slab fits VMEM AND there are enough grid
    # steps to keep both v7x TensorCores pipelined (or the tensor is so small
    # that per-step overhead dominates anyway).
    use_fused = (need_fused <= budget) and (B >= 4 or B * blk <= (8 << 20))

    if use_fused:
        kernel = functools.partial(_eca_fused_kernel,
                                   C=C_p, K=K, PAD=PAD, inv_hw=inv_hw)
        out = pl.pallas_call(
            kernel,
            out_shape=jax.ShapeDtypeStruct((B, C_p, HW_p), x.dtype),
            grid=(B,),
            in_specs=[
                pl.BlockSpec(memory_space=pltpu.MemorySpace.SMEM),     # taps
                pl.BlockSpec((None, C_p, HW_p), lambda b: (b, 0, 0)),  # x
            ],
            out_specs=pl.BlockSpec((None, C_p, HW_p), lambda b: (b, 0, 0)),
            compiler_params=pltpu.CompilerParams(
                dimension_semantics=("parallel",),
                vmem_limit_bytes=int(budget)),
            input_output_aliases=({1: 0} if donate_input else {}),
        )(conv_w, x2)
    else:
        # HW tile: largest multiple of 128 whose 2x in + 2x out double buffers
        # fit the per-generation budget; distribute evenly to avoid padding.
        hw_t_max = max(128, (budget // (5 * C_p * itemsize)) // 128 * 128)
        n_t = _cdiv(HW_p, hw_t_max)
        hw_t = _round_up(_cdiv(HW_p, n_t), 128)
        HW_pp = hw_t * n_t
        if HW_pp != x2.shape[-1]:
            x2 = jnp.pad(x2, ((0, 0), (0, 0), (0, HW_pp - x2.shape[-1])))

        # Pass 1: per-(batch, channel) sums, streamed over HW tiles (MXU).
        sums = pl.pallas_call(
            _eca_pool_kernel,
            out_shape=jax.ShapeDtypeStruct((B, C_p, 1), jnp.float32),
            grid=(B, n_t),
            in_specs=[pl.BlockSpec((None, C_p, hw_t), lambda b, t: (b, 0, t))],
            out_specs=pl.BlockSpec((None, C_p, 1), lambda b, t: (b, 0, 0)),
            compiler_params=pltpu.CompilerParams(
                dimension_semantics=("parallel", "arbitrary"),
                vmem_limit_bytes=int(budget)),
        )(x2)

        # Tiny (B, C) conv + sigmoid: leave to XLA, negligible cost.
        avg = sums[:, :, 0] * inv_hw
        avg_pad = jnp.pad(avg, ((0, 0), (PAD, PAD)))
        conv = jnp.zeros_like(avg)
        for j in range(K):
            conv = conv + conv_w[j] * avg_pad[:, j:j + C_p]
        gate = jax.nn.sigmoid(conv)[:, :, None]              # (B, C_p, 1) f32

        # Pass 2: tiled gate multiply, fully parallel grid.
        out = pl.pallas_call(
            _eca_gate_kernel,
            out_shape=jax.ShapeDtypeStruct((B, C_p, HW_pp), x.dtype),
            grid=(B, n_t),
            in_specs=[
                pl.BlockSpec((None, C_p, 1), lambda b, t: (b, 0, 0)),
                pl.BlockSpec((None, C_p, hw_t), lambda b, t: (b, 0, t)),
            ],
            out_specs=pl.BlockSpec((None, C_p, hw_t), lambda b, t: (b, 0, t)),
            compiler_params=pltpu.CompilerParams(
                dimension_semantics=("parallel", "parallel"),
                vmem_limit_bytes=int(budget)),
            input_output_aliases=({1: 0} if donate_input else {}),
        )(gate, x2)
        # TODO(synk): a single-pass variant with a +/-PAD channel halo would
        # avoid the second read of x but requires manual overlapping DMA.

    out = out[:, :C, :HW]
    return out.reshape(B, C, H, W)


def eca_reference(x, conv_w):
    """Plain-JAX reference mirroring the PyTorch forward."""
    B, C, H, W = x.shape
    K = conv_w.shape[0]
    PAD = K // 2
    avg = jnp.mean(x.astype(jnp.float32), axis=(2, 3))        # (B, C)
    avg_p = jnp.pad(avg, ((0, 0), (PAD, PAD)))                # zero-pad channels
    conv = jnp.zeros((B, C), jnp.float32)
    for j in range(K):
        conv = conv + conv_w[j] * avg_p[:, j:j + C]
    gate = jax.nn.sigmoid(conv).reshape(B, C, 1, 1)
    return (gate * x.astype(jnp.float32)).astype(x.dtype)


if __name__ == "__main__":
    # Module hyper-params (match ECA_Block.__init__ with gamma=2, b=1)
    B, C, H, W = 2, 16, 16, 16
    gamma, bias = 2, 1
    k = int(abs((math.log(C, 2) + bias) / gamma))
    k = k if k % 2 else k + 1                    # C=16 -> k=3, padding=1

    key = jax.random.PRNGKey(0)
    kx, kw = jax.random.split(key)
    x = jax.random.normal(kx, (B, C, H, W), dtype=jnp.float32)
    # Deterministic Conv1d(1,1,k,bias=False) weight, uniform(-1/sqrt(k), 1/sqrt(k))
    bound = 1.0 / math.sqrt(k)
    conv_w = jax.random.uniform(kw, (k,), jnp.float32, minval=-bound, maxval=bound)

    out = jax.block_until_ready(eca_block(x, conv_w))
    ref = eca_reference(x, conv_w)
    # Tolerance leaves margin for the MXU pooling pass precision vs jnp.mean.
    np.testing.assert_allclose(np.asarray(out), np.asarray(ref),
                               rtol=1e-3, atol=1e-5)
    print("KERNEL_OK")
</pallas_src>

<mosaic_0001>
module attributes {stable_mosaic.version = 11 : i64} {
  func.func @_eca_fused_kernel(%arg0: i32, %arg1: memref<3xf32, #tpu.memory_space<smem>>, %arg2: memref<1x16x256xf32, #tpu.memory_space<vmem>>, %arg3: memref<1x16x256xf32, #tpu.memory_space<vmem>>) attributes {dimension_semantics = [#tpu.dimension_semantics<parallel>], iteration_bounds = array<i64: 2>, scalar_prefetch = 0 : i64, scratch_operands = 0 : i64, tpu.core_type = #tpu.core_type<tc>, window_params = [{transform_indices = @transform_0, window_bounds = array<i64: 3>}, {transform_indices = @transform_1, window_bounds = array<i64: 1, 16, 256>}, {transform_indices = @transform_2, window_bounds = array<i64: 1, 16, 256>}]} {
    %cst = arith.constant 1.000000e+00 : f32
    %0 = vector.broadcast %cst : f32 to vector<256x1xf32>
    %c0 = arith.constant 0 : index
    %c0_0 = arith.constant 0 : index
    %c0_1 = arith.constant 0 : index
    %1 = vector.load %arg2[%c0, %c0_0, %c0_1] : memref<1x16x256xf32, #tpu.memory_space<vmem>>, vector<1x16x256xf32>
    %2 = vector.shape_cast %1 : vector<1x16x256xf32> to vector<16x256xf32>
    %cst_2 = arith.constant dense<0.000000e+00> : vector<16x1xf32>
    %3 = tpu.matmul %2, %0, %cst_2 {dimension_numbers = #tpu.dot_dimension_numbers<[1], [0], [0], [1], [0, 0, 1, 1], [], []>} : vector<16x256xf32>, vector<256x1xf32>, vector<16x1xf32> -> vector<16x1xf32>
    %cst_3 = arith.constant 3.906250e-03 : f32
    %4 = vector.broadcast %cst_3 : f32 to vector<16x1xf32>
    %5 = arith.mulf %3, %4 : vector<16x1xf32>
    %cst_4 = arith.constant 0.000000e+00 : f32
    %6 = vector.broadcast %cst_4 : f32 to vector<1x1xf32>
    %7 = tpu.concatenate %6, %5, %6 in 0 : vector<1x1xf32>, vector<16x1xf32>, vector<1x1xf32> -> vector<18x1xf32>
    %cst_5 = arith.constant 0.000000e+00 : f32
    %8 = vector.broadcast %cst_5 : f32 to vector<16x1xf32>
    %c0_6 = arith.constant 0 : index
    %9 = memref.load %arg1[%c0_6] : memref<3xf32, #tpu.memory_space<smem>>
    %10 = vector.extract_strided_slice %7 {offsets = [0, 0], sizes = [16, 1], strides = [1, 1]} : vector<18x1xf32> to vector<16x1xf32>
    %11 = vector.broadcast %9 : f32 to vector<16x1xf32>
    %12 = arith.mulf %11, %10 : vector<16x1xf32>
    %13 = arith.addf %8, %12 : vector<16x1xf32>
    %c1 = arith.constant 1 : index
    %14 = memref.load %arg1[%c1] : memref<3xf32, #tpu.memory_space<smem>>
    %15 = vector.extract_strided_slice %7 {offsets = [1, 0], sizes = [16, 1], strides = [1, 1]} : vector<18x1xf32> to vector<16x1xf32>
    %16 = vector.broadcast %14 : f32 to vector<16x1xf32>
    %17 = arith.mulf %16, %15 : vector<16x1xf32>
    %18 = arith.addf %13, %17 : vector<16x1xf32>
    %c2 = arith.constant 2 : index
    %19 = memref.load %arg1[%c2] : memref<3xf32, #tpu.memory_space<smem>>
    %20 = vector.extract_strided_slice %7 {offsets = [2, 0], sizes = [16, 1], strides = [1, 1]} : vector<18x1xf32> to vector<16x1xf32>
    %21 = vector.broadcast %19 : f32 to vector<16x1xf32>
    %22 = arith.mulf %21, %20 : vector<16x1xf32>
    %23 = arith.addf %18, %22 : vector<16x1xf32>
    %24 = arith.negf %23 : vector<16x1xf32>
    %25 = math.exp %24 : vector<16x1xf32>
    %cst_7 = arith.constant 1.000000e+00 : f32
    %26 = vector.broadcast %cst_7 : f32 to vector<16x1xf32>
    %27 = arith.addf %26, %25 : vector<16x1xf32>
    %28 = arith.divf %26, %27 : vector<16x1xf32>
    %c0_8 = arith.constant 0 : index
    %c0_9 = arith.constant 0 : index
    %c0_10 = arith.constant 0 : index
    %29 = vector.load %arg2[%c0_8, %c0_9, %c0_10] : memref<1x16x256xf32, #tpu.memory_space<vmem>>, vector<1x16x256xf32>
    %30 = vector.shape_cast %29 : vector<1x16x256xf32> to vector<16x256xf32>
    %31 = vector.broadcast %28 : vector<16x1xf32> to vector<16x256xf32>
    %32 = arith.mulf %30, %31 : vector<16x256xf32>
    %c0_11 = arith.constant 0 : index
    %c0_12 = arith.constant 0 : index
    %c0_13 = arith.constant 0 : index
    %33 = vector.load %arg3[%c0_11, %c0_12, %c0_13] : memref<1x16x256xf32, #tpu.memory_space<vmem>>, vector<1x16x256xf32>
    %34 = vector.shape_cast %33 : vector<1x16x256xf32> to vector<16x256xf32>
    %35 = vector.shape_cast %32 : vector<16x256xf32> to vector<1x16x256xf32>
    tpu.vector_store %arg3[%c0_11, %c0_12, %c0_13], %35 {strides = array<i32>} : memref<1x16x256xf32, #tpu.memory_space<vmem>>, vector<1x16x256xf32>,
    return
  }
  func.func @transform_0(%arg0: i32) -> i32 {
    %c0_i32 = arith.constant 0 : i32
    %c0_i32_0 = arith.constant 0 : i32
    return %c0_i32 : i32
  }
  func.func @transform_1(%arg0: i32) -> (i32, i32, i32) {
    %c0_i32 = arith.constant 0 : i32
    %c0_i32_0 = arith.constant 0 : i32
    %c0_i32_1 = arith.constant 0 : i32
    return %arg0, %c0_i32, %c0_i32_0 : i32, i32, i32
  }
  func.func @transform_2(%arg0: i32) -> (i32, i32, i32) {
    %c0_i32 = arith.constant 0 : i32
    %c0_i32_0 = arith.constant 0 : i32
    %c0_i32_1 = arith.constant 0 : i32
    return %arg0, %c0_i32, %c0_i32_0 : i32, i32, i32
  }
}

</mosaic_0001>

<llo_original>
// kernel: tpu_custom_call.1
$region0: #{tpu_custom_call.1}
  #allocation0 [shape = 'u32[]', space=smem, size = 0x4, offset = 0x4, fixed_abs, tag = 'smem constant byte address 0x4 - core index']
  #allocation1 [shape = 'u32[144,128]{1,0:T(1,128)}', space=vmem, size = 0x12000, scoped, tag = 'internal scratch']
  %s0 = inlined_call_operand.hbm [shape: f32[3], index: 0, kind: input, shape index: {}]
  %s1 = inlined_call_operand.hbm [shape: f32[2,16,256], index: 1, kind: input, shape index: {}]
  %s2 = inlined_call_operand.hbm [shape: f32[2,16,256], index: 2, kind: output, shape index: {}]
  %s3 = sld [smem:[#allocation0]]
  $region49: #{tpu_custom_call.1} parent=0
    _
  %s5 = ssub.s32 1, %s3
  %s6 = scalar_select 0, %s5, %s3
  $region1: #{tpu_custom_call.1} parent=0
    #allocation2 [shape = 'u8[512]{0}', space=smem, size = 0x200, scoped, tag = 'input window, operand 0, single buffered']
    #allocation3 [shape = 's32[2]{0}', space=sflag, size = 0x8, scoped, tag = 'scoped memory for tpu_custom_call.1']
    #allocation4 [shape = 's32[2]{0}', space=sflag, size = 0x8, scoped, tag = 'scoped memory for tpu_custom_call.1']
    #allocation5 [shape = 's32[2]{0}', space=sflag, size = 0x8, scoped, tag = 'scoped memory for tpu_custom_call.1']
    #allocation6 [shape = 'u8[32768]{0}', space=vmem, size = 0x8000, scoped, tag = 'input window, operand 1']
    #allocation7 [shape = 'u8[32768]{0}', space=vmem, size = 0x8000, scoped, tag = 'output window, operand 0']
    %7 = vsyncpa [#allocation5], 0
    %8 = vsyncpa [#allocation3], 0
    %s9 = scalar_lea.sflag [#allocation3], 1
    %10 = vsyncpa %s9, 0
    %11 = vsyncpa [#allocation4], 0
    %s12 = scalar_lea.sflag [#allocation4], 1
    %13 = vsyncpa %s12, 0
    loop: start=0, step=1, limit=4
    $region2: #{tpu_custom_call.1} parent=1 // loop_pre_header
      _
    $region3: #{tpu_custom_call.1} parent=1 // loop_header
      %s15 = sphi 0, %s19
      %p16 = scmp.ge.s32.totalorder %s15, 4
      %s23 = sphi 0, %s23
      %s25 = sphi 0, %s23
      %s26 = sphi 0, %s25
      %s40 = sphi 0, %s26
      %s46 = sphi 0, %s48
      %s49 = sphi 0, %s46
      %s50 = sphi 0, %s49
      %s66 = sphi 0, %s50
      %s72 = sphi 0, %s74
      %s75 = sphi 0, %s72
      %s76 = sphi 0, %s75
      %s92 = sphi 0, %s76
    $region4: #{tpu_custom_call.1} parent=1 // loop_header_branch
      %18 = sbr.rel (%p16) target = $region8
    $region5: #{tpu_custom_call.1} parent=1 // loop_body
      %s20 = ssub.s32 %s15, 1
      %s21 = ssub.s32 %s15, 2
      %s22 = sadd.s32 %s15, 1
      %s24 = sadd.s32 %s23, 1
      %p27 = scmp.eq.s32.totalorder %s15, 1
      %p28 = scmp.ne.s32.totalorder %s23, %s25
      %p29 = scmp.eq.s32.totalorder %s15, 0
      %p30 = por %p28, %p29
      %p31 = scmp.ne.s32.totalorder %s23, %s25
      %p32 = scmp.eq.s32.totalorder %s20, 1
      %p33 = por %p31, %p32
      %p34 = scmp.ne.s32.totalorder %s25, %s26
      %p35 = scmp.eq.s32.totalorder %s20, 0
      %p36 = por %p34, %p35
      %p37 = scmp.ne.s32.totalorder %s25, %s26
      %p38 = scmp.eq.s32.totalorder %s21, 1
      %p39 = por %p37, %p38
      %p41 = scmp.ne.s32.totalorder %s26, %s40
      %p42 = scmp.eq.s32.totalorder %s21, 0
      %p43 = por %p41, %p42
      %s44 = ssub.s32 %s15, %s22
      %p45 = scmp.eq.s32.totalorder %s44, 0
      %s47 = sadd.s32 %s46, 1
      %s48 = scalar_select %p45, %s46, %s47
      %p51 = pneg %p45
      %p52 = scmp.eq.s32.totalorder %s15, 1
      %p53 = por %p51, %p52
      %p54 = scmp.ne.s32.totalorder %s46, %s49
      %p55 = scmp.eq.s32.totalorder %s15, 0
      %p56 = por %p54, %p55
      %p57 = scmp.ne.s32.totalorder %s46, %s49
      %p58 = scmp.eq.s32.totalorder %s20, 1
      %p59 = por %p57, %p58
      %p60 = scmp.ne.s32.totalorder %s49, %s50
      %p61 = scmp.eq.s32.totalorder %s20, 0
      %p62 = por %p60, %p61
      %p63 = scmp.ne.s32.totalorder %s49, %s50
      %p64 = scmp.eq.s32.totalorder %s21, 1
      %p65 = por %p63, %p64
      %p67 = scmp.ne.s32.totalorder %s50, %s66
      %p68 = scmp.eq.s32.totalorder %s21, 0
      %p69 = por %p67, %p68
      %s70 = ssub.s32 %s15, %s22
      %p71 = scmp.eq.s32.totalorder %s70, 0
      %s73 = sadd.s32 %s72, 1
      %s74 = scalar_select %p71, %s72, %s73
      %p77 = pneg %p71
      %p78 = scmp.eq.s32.totalorder %s15, 1
      %p79 = por %p77, %p78
      %p80 = scmp.ne.s32.totalorder %s72, %s75
      %p81 = scmp.eq.s32.totalorder %s15, 0
      %p82 = por %p80, %p81
      %p83 = scmp.ne.s32.totalorder %s72, %s75
      %p84 = scmp.eq.s32.totalorder %s20, 1
      %p85 = por %p83, %p84
      %p86 = scmp.ne.s32.totalorder %s75, %s76
      %p87 = scmp.eq.s32.totalorder %s20, 0
      %p88 = por %p86, %p87
      %p89 = scmp.ne.s32.totalorder %s75, %s76
      %p90 = scmp.eq.s32.totalorder %s21, 1
      %p91 = por %p89, %p90
      %p93 = scmp.ne.s32.totalorder %s76, %s92
      %p94 = scmp.eq.s32.totalorder %s21, 0
      %p95 = por %p93, %p94
      %p96 = scmp.le.s32.totalorder 1, %s15
      %p97 = scmp.lt.s32.totalorder %s15, 3
      %p98 = pnand %p96, %p97
      %p99 = pneg %p98
      // Predicated region
      $region9: #{tpu_custom_call.1} parent=5 // pred_check
        _
      $region10: #{tpu_custom_call.1} parent=5 // pred_check_branch
        %101 = sbr.rel (%p98) target = $region12
      $region11: #{tpu_custom_call.1} parent=5 // pred_region
        %s102 = ssub.s32 %s15, 1
        // Predicated region
        $region13: #{tpu_custom_call.1} parent=11 // pred_check
          %p103 = pneg %p36
        $region14: #{tpu_custom_call.1} parent=11 // pred_check_branch
          %105 = sbr.rel (%p103) target = $region16
        $region15: #{tpu_custom_call.1} parent=11 // pred_region
          %s107 = ssub.s32 16, 16
          %108 = vsyncadd [#allocation5], %s107
          %111 = dma.hbm_to_smem %s0, 16, [#allocation2], [#allocation5]
        $region16: #{tpu_custom_call.1} parent=11 // pred_fallthru
          _
      $region12: #{tpu_custom_call.1} parent=5 // pred_fallthru
        _
      %p112 = scmp.lt.s32.totalorder %s15, 2
      // Predicated region
      $region17: #{tpu_custom_call.1} parent=5 // pred_check
        %p113 = pneg %p112
      $region18: #{tpu_custom_call.1} parent=5 // pred_check_branch
        %115 = sbr.rel (%p113) target = $region20
      $region19: #{tpu_custom_call.1} parent=5 // pred_region
        // Predicated region
        $region21: #{tpu_custom_call.1} parent=19 // pred_check
          %p116 = pneg %p56
        $region22: #{tpu_custom_call.1} parent=19 // pred_check_branch
          %118 = sbr.rel (%p116) target = $region24
        $region23: #{tpu_custom_call.1} parent=19 // pred_region
          %s119 = sand.u32 %s46, 1
          %s120 = scalar_lea.sflag [#allocation3], %s119
          %s121 = sand.u32 %s46, 1
          %s122 = smul.addr %s121, 32
          %s123 = scalar_lea.vmem [#allocation6], %s122
          %s125 = ssub.s32 512, 512
          %126 = vsyncadd %s120, %s125
          %s127 = smul.addr %s15, 4
          %s128 = smul.addr %s127, 128
          %s129 = scalar_lea.hbm %s1, %s128
          %s130 = sshll.u32 %s123, 4
          %s131 = int_to_ptr.vmem [resolvable:$true] %s130
          %136 = dma.hbm_to_vmem [thread:$0]  %s129, 512, %s131, %s120, 256, 256, 16
        $region24: #{tpu_custom_call.1} parent=19 // pred_fallthru
          _
      $region20: #{tpu_custom_call.1} parent=5 // pred_fallthru
        _
      %p137 = scmp.le.s32.totalorder 1, %s15
      %p138 = scmp.lt.s32.totalorder %s15, 3
      %p139 = pnand %p137, %p138
      %p140 = pneg %p139
      // Predicated region
      $region25: #{tpu_custom_call.1} parent=5 // pred_check
        _
      $region26: #{tpu_custom_call.1} parent=5 // pred_check_branch
        %142 = sbr.rel (%p139) target = $region28
      $region27: #{tpu_custom_call.1} parent=5 // pred_region
        %s143 = ssub.s32 %s15, 1
        // Predicated region
        $region29: #{tpu_custom_call.1} parent=27 // pred_check
          %p144 = pneg %p36
        $region30: #{tpu_custom_call.1} parent=27 // pred_check_branch
          %146 = sbr.rel (%p144) target = $region32
        $region31: #{tpu_custom_call.1} parent=27 // pred_region
          %147 = dma.done [#allocation5], 16
        $region32: #{tpu_custom_call.1} parent=27 // pred_fallthru
          _
        %s148 = sand.u32 %s49, 1
        %s149 = scalar_lea.sflag [#allocation3], %s148
        %s150 = sand.u32 %s49, 1
        %s151 = smul.addr %s150, 32
        %s152 = scalar_lea.vmem [#allocation6], %s151
        // Predicated region
        $region33: #{tpu_custom_call.1} parent=27 // pred_check
          %p153 = pneg %p62
        $region34: #{tpu_custom_call.1} parent=27 // pred_check_branch
          %155 = sbr.rel (%p153) target = $region36
        $region35: #{tpu_custom_call.1} parent=27 // pred_region
          %156 = dma.done %s149, 512
        $region36: #{tpu_custom_call.1} parent=27 // pred_fallthru
          _
        %157 = sfence
        %p158 = pneg %p36
        %p159 = pneg %p33
        %s160 = sand.u32 %s49, 1
        %s161 = scalar_lea.sflag [#allocation3], %s160
        %s162 = sand.u32 %s49, 1
        %s163 = smul.addr %s162, 32
        %s164 = scalar_lea.vmem [#allocation6], %s163
        %p165 = pneg %p62
        %p166 = pneg %p59
        %p167 = pneg %p88
        %p168 = pneg %p85
        %s169 = sand.u32 %s75, 1
        %s170 = scalar_lea.sflag [#allocation4], %s169
        %s171 = sand.u32 %s75, 1
        %s172 = smul.addr %s171, 32
        %s173 = scalar_lea.vmem [#allocation7], %s172
        %v174 = vld [vmem:[%s152] sm:$0xff]
        %v175 = vld [vmem:[%s152 + $0x8] sm:$0xff]
        %v176 = vld [vmem:[%s152 + $0x10] sm:$0xff]
        %v177 = vld [vmem:[%s152 + $0x18] sm:$0xff]
        %178 = vmatprep.subr.mxu0 0.0
        %179 = vmatpush1.msra.mxu0 1.0
        %180 = vmatprep.subr.mxu0 0.0
        %181 = vmatpush1.msra.mxu0 1.0
        %182 = vmatprep.subr.mxu0 0.0
        %183 = vmatpush1.msra.mxu0 1.0
        %184 = vmatprep.subr.mxu0 0.0
        %185 = vmatpush1.msra.mxu0 1.0
        %186 = vmatprep.subr.mxu0 0.0
        %187 = vmatpush1.msra.mxu0 1.0
        %188 = vmatprep.subr.mxu0 0.0
        %189 = vmatpush1.msra.mxu0 1.0
        %190 = vmatprep.subr.mxu0 0.0
        %191 = vmatpush1.msra.mxu0 1.0
        %192 = vmatprep.subr.mxu0 0.0
        %193 = vmatpush1.msra.mxu0 1.0
        %194 = vmatprep.subr.mxu0 0.0
        %195 = vmatpush1.msra.mxu0 1.0
        %196 = vmatprep.subr.mxu0 0.0
        %197 = vmatpush1.msra.mxu0 1.0
        %198 = vmatprep.subr.mxu0 0.0
        %199 = vmatpush1.msra.mxu0 1.0
        %200 = vmatprep.subr.mxu0 0.0
        %201 = vmatpush1.msra.mxu0 1.0
        %202 = vmatprep.subr.mxu0 0.0
        %203 = vmatpush1.msra.mxu0 1.0
        %204 = vmatprep.subr.mxu0 0.0
        %205 = vmatpush1.msra.mxu0 1.0
        %206 = vmatprep.subr.mxu0 0.0
        %207 = vmatpush1.msra.mxu0 1.0
        %208 = vmatprep.subr.mxu0 0.0
        %209 = vmatpush1.msra.mxu0 1.0
        %210 = vmatprep.subr.mxu0 0.0
        %211 = vmatpush1.msra.mxu0 1.0
        %212 = vmatprep.subr.mxu0 0.0
        %213 = vmatpush1.msra.mxu0 1.0
        %214 = vmatprep.subr.mxu0 0.0
        %215 = vmatpush1.msra.mxu0 1.0
        %216 = vmatprep.subr.mxu0 0.0
        %217 = vmatpush1.msra.mxu0 1.0
        %218 = vmatprep.subr.mxu0 0.0
        %219 = vmatpush1.msra.mxu0 1.0
        %220 = vmatprep.subr.mxu0 0.0
        %221 = vmatpush1.msra.mxu0 1.0
        %222 = vmatprep.subr.mxu0 0.0
        %223 = vmatpush1.msra.mxu0 1.0
        %224 = vmatprep.subr.mxu0 0.0
        %225 = vmatpush1.msra.mxu0 1.0
        %226 = vmatprep.subr.mxu0 0.0
        %227 = vmatpush1.msra.mxu0 1.0
        %228 = vmatprep.subr.mxu0 0.0
        %229 = vmatpush1.msra.mxu0 1.0
        %230 = vmatprep.subr.mxu0 0.0
        %231 = vmatpush1.msra.mxu0 1.0
        %232 = vmatprep.subr.mxu0 0.0
        %233 = vmatpush1.msra.mxu0 1.0
        %234 = vmatprep.subr.mxu0 0.0
        %235 = vmatpush1.msra.mxu0 1.0
        %236 = vmatprep.subr.mxu0 0.0
        %237 = vmatpush1.msra.mxu0 1.0
        %238 = vmatprep.subr.mxu0 0.0
        %239 = vmatpush1.msra.mxu0 1.0
        %240 = vmatprep.subr.mxu0 0.0
        %241 = vmatpush1.msra.mxu0 1.0
        %242 = vmatprep.mubr.f32.mxu0 %v175
        %243 = vmatmul.mubr.f32.gmra.mrb[0].mxu0 %v174
        %v244 = vpop.f32.mrb[0].mxu0
        %v245 = vadd.f32 0.0, %v244
        %v246 = vpop.f32.mrb[0].mxu0
        %247 = vmatprep.mubr.f32.mxu0 %v177
        %248 = vmatmul.mubr.f32.gmra.mrb[0].mxu0 %v176
        %v249 = vpop.f32.mrb[0].mxu0
        %v250 = vadd.f32 0.0, %v249
        %v251 = vpop.f32.mrb[0].mxu0
        %252 = vdwg.mxu0
        %v253 = vmul.f32 %v245, 0.00390625
        %v254 = vmul.f32 %v250, 0.00390625
        %vm257 = vcmask 1040384
        %v258 = vrot.slane %v253, 7
        %v259 = vrot.slane %v254, 7
        %v260 = vsel %vm257, %v258, %v259
        %v264 = vsel %vm257, 0.0, %v258
        %v265 = vsel %vm257, %v259, 0.0
        %s266 = sld [smem:[#allocation2]]
        %v267 = vstv %s266
        %v268 = vmul.f32 %v267, %v264
        %v269 = vmul.f32 %v267, %v260
        %v270 = vadd.f32 %v268, 0.0
        %v271 = vadd.f32 %v269, 0.0
        %s272 = sld [smem:[#allocation2 + $0x1]]
        %v273 = vstv %s272
        %v274 = vmul.f32 %v273, %v264
        %v275 = vmul.f32 %v273, %v260
        %v276 = vmul.f32 %v273, %v265
        %vm280 = vcmask 1046528
        %v281 = vrot.slane %v274, 1
        %v282 = vrot.slane %v275, 1
        %v283 = vsel %vm280, %v281, %v282
        %v284 = vrot.slane %v276, 1
        %v285 = vsel %vm280, %v282, %v284
        %v288 = vadd.f32 %v270, %v283
        %v289 = vadd.f32 %v271, %v285
        %s290 = sld [smem:[#allocation2 + $0x2]]
        %v291 = vstv %s290
        %v292 = vmul.f32 %v291, %v264
        %v293 = vmul.f32 %v291, %v260
        %v294 = vmul.f32 %v291, %v265
        %vm298 = vcmask 1045504
        %v299 = vrot.slane %v292, 2
        %v300 = vrot.slane %v293, 2
        %v301 = vsel %vm298, %v299, %v300
        %v302 = vrot.slane %v294, 2
        %v303 = vsel %vm298, %v300, %v302
        %v306 = vadd.f32 %v288, %v301
        %v307 = vadd.f32 %v289, %v303
        %v308 = vxor.u32 %v306, 2147483648
        %v309 = vxor.u32 %v307, 2147483648
        %v310 = vmul.f32 %v308, 1.442695
        %v311 = vpow.pop %v310
        %v312 = vmul.f32 %v309, 1.442695
        %v313 = vpow.pop %v312
        %v314 = vadd.f32 %v311, 1.0
        %v315 = vadd.f32 %v313, 1.0
        %v316 = vrcp.pop %v314
        %v317 = vmul.f32 1.0, %v316
        %v318 = vrcp.pop %v315
        %v319 = vmul.f32 1.0, %v318
        %321 = vset.pattern.permute.xlu0 0
        %322 = vperm.xlu0 %321, %v317
        %v323 = vpop.permute.xlu0 %322
        %326 = vset.pattern.permute.xlu0 0
        %327 = vperm.xlu0 %326, %v319
        %v328 = vpop.permute.xlu0 %327
        %v330 = vmul.f32 %v174, %v323
        %v331 = vmul.f32 %v175, %v323
        %v332 = vmul.f32 %v176, %v328
        %v333 = vmul.f32 %v177, %v328
        %334 = vst [vmem:[%s173] sm:$0xff] %v330
        %335 = vst [vmem:[%s173 + $0x8] sm:$0xff] %v331
        %336 = vst [vmem:[%s173 + $0x10] sm:$0xff] %v332
        %337 = vst [vmem:[%s173 + $0x18] sm:$0xff] %v333
        %s338 = sand.u32 %s75, 1
        %s339 = scalar_lea.sflag [#allocation4], %s338
        %s340 = sand.u32 %s75, 1
        %s341 = smul.addr %s340, 32
        %s342 = scalar_lea.vmem [#allocation7], %s341
        // Predicated region
        $region37: #{tpu_custom_call.1} parent=27 // pred_check
          %p343 = pneg %p85
        $region38: #{tpu_custom_call.1} parent=27 // pred_check_branch
          %345 = sbr.rel (%p343) target = $region40
        $region39: #{tpu_custom_call.1} parent=27 // pred_region
          %s347 = ssub.s32 512, 512
          %348 = vsyncadd %s339, %s347
          %s349 = smul.addr %s20, 4
          %s350 = smul.addr %s349, 128
          %s351 = scalar_lea.hbm %s2, %s350
          %s352 = sshll.u32 %s342, 4
          %s353 = int_to_ptr.vmem [resolvable:$true] %s352
          %358 = dma.vmem_to_hbm [thread:$0]  %s353, 512, %s351, %s339, 256, 256, 16
        $region40: #{tpu_custom_call.1} parent=27 // pred_fallthru
          _
      $region28: #{tpu_custom_call.1} parent=5 // pred_fallthru
        _
      %p359 = scmp.le.s32.totalorder 2, %s15
      // Predicated region
      $region41: #{tpu_custom_call.1} parent=5 // pred_check
        %p360 = pneg %p359
      $region42: #{tpu_custom_call.1} parent=5 // pred_check_branch
        %362 = sbr.rel (%p360) target = $region44
      $region43: #{tpu_custom_call.1} parent=5 // pred_region
        %s363 = ssub.s32 %s15, 2
        // Predicated region
        $region45: #{tpu_custom_call.1} parent=43 // pred_check
          %p364 = pneg %p91
        $region46: #{tpu_custom_call.1} parent=43 // pred_check_branch
          %366 = sbr.rel (%p364) target = $region48
        $region47: #{tpu_custom_call.1} parent=43 // pred_region
          %s367 = sand.u32 %s76, 1
          %s368 = scalar_lea.sflag [#allocation4], %s367
          %s369 = sand.u32 %s76, 1
          %s370 = smul.addr %s369, 32
          %s371 = scalar_lea.vmem [#allocation7], %s370
          %372 = dma.done %s368, 512
        $region48: #{tpu_custom_call.1} parent=43 // pred_fallthru
          _
      $region44: #{tpu_custom_call.1} parent=5 // pred_fallthru
        _
    $region6: #{tpu_custom_call.1} parent=1 // loop_footer
      %s19 = sadd.s32 1, %s15
    $region7: #{tpu_custom_call.1} parent=1 // loop_footer_branch
      %14 = sbr.rel target = $region3
    $region8: #{tpu_custom_call.1} parent=1 // loop_exit
      _
    %373 = vsyncpa [#allocation3], 1
    %s374 = scalar_lea.sflag [#allocation3], 1
    %375 = vsyncpa %s374, 1
    %376 = vsyncpa [#allocation4], 1
    %s377 = scalar_lea.sflag [#allocation4], 1
    %378 = vsyncpa %s377, 1
    %379 = vsyncpa [#allocation5], 1
    %s380 = scalar_lea.sflag [#allocation5], 1
    %381 = vsyncpa %s380, 1

</llo_original>
